<compile_context>
chip_gen: v6e
topology: v6e:2x2x1
jax: 0.10.0
libtpu: 0.0.40
codegen_flags: <defaults>
</compile_context>

<pallas_src>
import functools

import jax
import jax.numpy as jnp
from jax.experimental import pallas as pl
from jax.experimental.pallas import tpu as pltpu


def _partial_bce_kernel(logits_ref, targets_ref, mask_ref, weights_ref, out_ref):
    x = logits_ref[...].astype(jnp.float32)   # (TB, C)
    t = targets_ref[...].astype(jnp.float32)  # (TB, C)
    m = mask_ref[...].astype(jnp.float32)     # (TB, C)
    w = weights_ref[...].astype(jnp.float32)  # (TB, 1)

    # Canonical numerically-stable BCE-with-logits:
    #   max(x,0) - x*t + log1p(exp(-|x|))
    vals = jnp.maximum(x, 0.0) - x * t + jnp.log1p(jnp.exp(-jnp.abs(x)))

    # Masked per-row sum, per-row weight, then one per-block partial sum.
    per_row = jnp.sum(vals * m, axis=-1, keepdims=True) * w   # (TB, 1)
    out_ref[0, 0] = jnp.sum(per_row)                          # this block's partial


def _choose_block_rows(B, C, itemsize):
    # Keep the double-buffered working set (3 row-tiled inputs x 2 buffers)
    # around 8 MiB: fits every generation's default scoped VMEM with headroom
    # (v5e 16 MiB, v6e/v7x 32 MiB; v7x physical VMEM is only 64 MiB).
    budget_bytes = 8 * 1024 * 1024
    bytes_per_block_row = 3 * 2 * C * max(1, itemsize)
    br = max(8, budget_bytes // bytes_per_block_row)
    # Don't exceed the (8-padded) batch.
    b_pad8 = ((B + 7) // 8) * 8
    br = min(br, b_pad8)
    # Sublane-aligned.
    br = max(8, (br // 8) * 8)
    return int(br)


@functools.partial(jax.jit, static_argnames=("block_rows",))
def partial_bce_loss(logits, targets, targets_mask, weights=None, *, block_rows=None):
    B, C = logits.shape
    if weights is None:
        weights = jnp.ones((B,), dtype=jnp.float32)
    weights2d = weights.reshape(B, 1)

    if block_rows is None:
        itemsize = max(logits.dtype.itemsize,
                       targets.dtype.itemsize,
                       targets_mask.dtype.itemsize)
        block_rows = _choose_block_rows(B, C, itemsize)

    num_blocks = pl.cdiv(B, block_rows)
    b_pad = num_blocks * block_rows
    if b_pad != B:
        pad = b_pad - B
        # Zero padding: mask=0 and weight=0 make padded rows contribute nothing.
        logits = jnp.pad(logits, ((0, pad), (0, 0)))
        targets = jnp.pad(targets, ((0, pad), (0, 0)))
        targets_mask = jnp.pad(targets_mask, ((0, pad), (0, 0)))
        weights2d = jnp.pad(weights2d, ((0, pad), (0, 0)))

    row_spec = pl.BlockSpec((block_rows, C), lambda i: (i, 0))
    w_spec = pl.BlockSpec((block_rows, 1), lambda i: (i, 0))
    out_spec = pl.BlockSpec((1, 1), lambda i: (i, 0), memory_space=pltpu.SMEM)

    partials = pl.pallas_call(
        _partial_bce_kernel,
        out_shape=jax.ShapeDtypeStruct((num_blocks, 1), jnp.float32),
        grid_spec=pltpu.PrefetchScalarGridSpec(
            num_scalar_prefetch=0,
            grid=(num_blocks,),
            in_specs=[row_spec, row_spec, row_spec, w_spec],
            out_specs=out_spec,
        ),
        compiler_params=pltpu.CompilerParams(
            # Each block writes its own output slot -> safe to shard across
            # TensorCores (v7x megacore); harmless on v5e/v6e.
            dimension_semantics=("parallel",),
        ),
    )(logits, targets, targets_mask, weights2d)

    # Final tiny reduction + mean over the original batch size.
    return jnp.sum(partials) / B


def _reference(logits, targets, targets_mask, weights=None):
    ls = jax.nn.log_sigmoid
    pos_vals = -targets * ls(logits)
    neg_vals = -ls(-logits) * (1.0 - targets)
    vals = pos_vals + neg_vals
    losses = jnp.sum(vals * targets_mask, axis=-1)
    if weights is not None:
        losses = losses * weights
    return jnp.mean(losses)


if __name__ == "__main__":
    key = jax.random.PRNGKey(0)
    k1, k2, k3, k4 = jax.random.split(key, 4)

    # Small multi-label classification problem.
    B, C = 16, 256
    logits = jax.random.normal(k1, (B, C), dtype=jnp.float32)
    targets = (jax.random.uniform(k2, (B, C)) > 0.5).astype(jnp.float32)
    targets_mask = (jax.random.uniform(k3, (B, C)) > 0.3).astype(jnp.float32)
    weights = jax.random.uniform(k4, (B, ), dtype=jnp.float32) + 0.5

    out = jax.block_until_ready(partial_bce_loss(logits, targets, targets_mask, weights))
    ref = _reference(logits, targets, targets_mask, weights)
    assert jnp.allclose(out, ref, rtol=1e-5, atol=1e-5), (out, ref)

    # weights=None path.
    out_nw = jax.block_until_ready(partial_bce_loss(logits, targets, targets_mask))
    ref_nw = _reference(logits, targets, targets_mask)
    assert jnp.allclose(out_nw, ref_nw, rtol=1e-5, atol=1e-5), (out_nw, ref_nw)

    # Ragged batch (exercises the zero-padding path).
    Br = 13
    out_r = jax.block_until_ready(
        partial_bce_loss(logits[:Br], targets[:Br], targets_mask[:Br], weights[:Br]))
    ref_r = _reference(logits[:Br], targets[:Br], targets_mask[:Br], weights[:Br])
    assert jnp.allclose(out_r, ref_r, rtol=1e-5, atol=1e-5), (out_r, ref_r)

    print("KERNEL_OK")
</pallas_src>

<mosaic_0001>
module attributes {stable_mosaic.version = 11 : i64} {
  func.func @_partial_bce_kernel(%arg0: i32, %arg1: memref<16x256xf32, #tpu.memory_space<vmem>>, %arg2: memref<16x256xf32, #tpu.memory_space<vmem>>, %arg3: memref<16x256xf32, #tpu.memory_space<vmem>>, %arg4: memref<16x1xf32, #tpu.memory_space<vmem>>, %arg5: memref<1x1xf32, #tpu.memory_space<smem>>) attributes {dimension_semantics = [#tpu.dimension_semantics<parallel>], iteration_bounds = array<i64: 1>, scalar_prefetch = 0 : i64, scratch_operands = 0 : i64, tpu.core_type = #tpu.core_type<tc>, window_params = [{transform_indices = @transform_0, window_bounds = array<i64: 16, 256>}, {transform_indices = @transform_1, window_bounds = array<i64: 16, 256>}, {transform_indices = @transform_2, window_bounds = array<i64: 16, 256>}, {transform_indices = @transform_3, window_bounds = array<i64: 16, 1>}, {transform_indices = @transform_4, window_bounds = array<i64: 1, 1>}]} {
    %c0 = arith.constant 0 : index
    %c0_0 = arith.constant 0 : index
    %0 = vector.load %arg1[%c0, %c0_0] : memref<16x256xf32, #tpu.memory_space<vmem>>, vector<16x256xf32>
    %c0_1 = arith.constant 0 : index
    %c0_2 = arith.constant 0 : index
    %1 = vector.load %arg2[%c0_1, %c0_2] : memref<16x256xf32, #tpu.memory_space<vmem>>, vector<16x256xf32>
    %c0_3 = arith.constant 0 : index
    %c0_4 = arith.constant 0 : index
    %2 = vector.load %arg3[%c0_3, %c0_4] : memref<16x256xf32, #tpu.memory_space<vmem>>, vector<16x256xf32>
    %c0_5 = arith.constant 0 : index
    %c0_6 = arith.constant 0 : index
    %3 = vector.load %arg4[%c0_5, %c0_6] : memref<16x1xf32, #tpu.memory_space<vmem>>, vector<16x1xf32>
    %cst = arith.constant 0.000000e+00 : f32
    %4 = vector.broadcast %cst : f32 to vector<16x256xf32>
    %5 = arith.maximumf %0, %4 : vector<16x256xf32>
    %6 = arith.mulf %0, %1 : vector<16x256xf32>
    %7 = arith.subf %5, %6 : vector<16x256xf32>
    %8 = math.absf %0 : vector<16x256xf32>
    %cst_7 = arith.constant 0.000000e+00 : f32
    %9 = vector.broadcast %cst_7 : f32 to vector<16x256xf32>
    %10 = arith.subf %9, %8 : vector<16x256xf32>
    %11 = math.exp %10 : vector<16x256xf32>
    %12 = math.log1p %11 : vector<16x256xf32>
    %13 = arith.addf %7, %12 : vector<16x256xf32>
    %14 = arith.mulf %13, %2 : vector<16x256xf32>
    %cst_8 = arith.constant dense<0.000000e+00> : vector<16xf32>
    %15 = vector.multi_reduction <add>, %14, %cst_8 [1] : vector<16x256xf32> to vector<16xf32>
    %16 = vector.shape_cast %15 : vector<16xf32> to vector<16x1xf32>
    %17 = arith.mulf %16, %3 : vector<16x1xf32>
    %18 = vector.shape_cast %17 : vector<16x1xf32> to vector<1x16x1xf32>
    %cst_9 = arith.constant dense<0.000000e+00> : vector<1xf32>
    %19 = vector.multi_reduction <add>, %18, %cst_9 [1, 2] : vector<1x16x1xf32> to vector<1xf32>
    %20 = vector.shape_cast %19 : vector<1xf32> to vector<1x1x1xf32>
    %21 = vector.extract %20[0, 0, 0] : f32 from vector<1x1x1xf32>
    %c0_10 = arith.constant 0 : index
    %c0_11 = arith.constant 0 : index
    %22 = memref.load %arg5[%c0_10, %c0_11] : memref<1x1xf32, #tpu.memory_space<smem>>
    memref.store %21, %arg5[%c0_10, %c0_11] : memref<1x1xf32, #tpu.memory_space<smem>>
    return
  }
  func.func @transform_0(%arg0: i32) -> (i32, i32) {
    %c0_i32 = arith.constant 0 : i32
    %c0_i32_0 = arith.constant 0 : i32
    return %arg0, %c0_i32 : i32, i32
  }
  func.func @transform_1(%arg0: i32) -> (i32, i32) {
    %c0_i32 = arith.constant 0 : i32
    %c0_i32_0 = arith.constant 0 : i32
    return %arg0, %c0_i32 : i32, i32
  }
  func.func @transform_2(%arg0: i32) -> (i32, i32) {
    %c0_i32 = arith.constant 0 : i32
    %c0_i32_0 = arith.constant 0 : i32
    return %arg0, %c0_i32 : i32, i32
  }
  func.func @transform_3(%arg0: i32) -> (i32, i32) {
    %c0_i32 = arith.constant 0 : i32
    %c0_i32_0 = arith.constant 0 : i32
    return %arg0, %c0_i32 : i32, i32
  }
  func.func @transform_4(%arg0: i32) -> (i32, i32) {
    %c0_i32 = arith.constant 0 : i32
    %c0_i32_0 = arith.constant 0 : i32
    return %arg0, %c0_i32 : i32, i32
  }
}

</mosaic_0001>

<llo_original>
// kernel: partial_bce_loss.1
$region0: #{partial_bce_loss.1}
  #allocation0 [shape = 'u32[]', space=smem, size = 0x4, offset = 0x4, fixed_abs, tag = 'smem constant byte address 0x4 - core index']
  #allocation1 [shape = 'u32[144,128]{1,0:T(1,128)}', space=vmem, size = 0x12000, scoped, tag = 'internal scratch']
  %s0 = inlined_call_operand.hbm [shape: f32[16,256], index: 0, kind: input, shape index: {}]
  %s1 = inlined_call_operand.hbm [shape: f32[16,256], index: 1, kind: input, shape index: {}]
  %s2 = inlined_call_operand.hbm [shape: f32[16,256], index: 2, kind: input, shape index: {}]
  %s3 = inlined_call_operand.vmem [shape: f32[16,1], index: 3, kind: input, shape index: {}]
  %s4 = inlined_call_operand.hbm [shape: f32[1,1], index: 4, kind: output, shape index: {}]
  %s5 = sld [smem:[#allocation0]]
  $region38: #{partial_bce_loss.1} parent=0
    _
  %s7 = ssub.s32 1, %s5
  %s8 = scalar_select 0, %s7, %s5
  $region1: #{partial_bce_loss.1} parent=0
    #allocation2 [shape = 'u8[16384]{0}', space=vmem, size = 0x4000, scoped, tag = 'input window, operand 0, single buffered']
    #allocation3 [shape = 's32[1]{0}', space=sflag, size = 0x4, scoped, tag = 'scoped memory for partial_bce_loss.1']
    #allocation4 [shape = 's32[1]{0}', space=sflag, size = 0x4, scoped, tag = 'scoped memory for partial_bce_loss.1']
    #allocation5 [shape = 'u8[16384]{0}', space=vmem, size = 0x4000, scoped, tag = 'input window, operand 1, single buffered']
    #allocation6 [shape = 's32[1]{0}', space=sflag, size = 0x4, scoped, tag = 'scoped memory for partial_bce_loss.1']
    #allocation7 [shape = 'u8[16384]{0}', space=vmem, size = 0x4000, scoped, tag = 'input window, operand 2, single buffered']
    #allocation8 [shape = 'u8[512]{0}', space=smem, size = 0x200, scoped, tag = 'output window, operand 0, single buffered']
    %9 = vsyncpa [#allocation3], 0
    %10 = vsyncpa [#allocation6], 0
    %11 = vsyncpa [#allocation4], 0
    // Predicated region
    $region2: #{partial_bce_loss.1} parent=1 // pred_check
      _
    $region3: #{partial_bce_loss.1} parent=1 // pred_check_branch
      %13 = sbr.rel (0) target = $region5
    $region4: #{partial_bce_loss.1} parent=1 // pred_region
      %s15 = ssub.s32 512, 512
      %16 = vsyncadd [#allocation3], %s15
      %s17 = sshll.u32 [#allocation2], 4
      %s18 = int_to_ptr.vmem [resolvable:$true] %s17
      %23 = dma.hbm_to_vmem [thread:$0]  %s0, 512, %s18, [#allocation3], 256, 256, 16
    $region5: #{partial_bce_loss.1} parent=1 // pred_fallthru
      _
    // Predicated region
    $region6: #{partial_bce_loss.1} parent=1 // pred_check
      _
    $region7: #{partial_bce_loss.1} parent=1 // pred_check_branch
      %25 = sbr.rel (0) target = $region9
    $region8: #{partial_bce_loss.1} parent=1 // pred_region
      %s27 = ssub.s32 512, 512
      %28 = vsyncadd [#allocation6], %s27
      %s29 = sshll.u32 [#allocation5], 4
      %s30 = int_to_ptr.vmem [resolvable:$true] %s29
      %35 = dma.hbm_to_vmem [thread:$0]  %s1, 512, %s30, [#allocation6], 256, 256, 16
    $region9: #{partial_bce_loss.1} parent=1 // pred_fallthru
      _
    // Predicated region
    $region10: #{partial_bce_loss.1} parent=1 // pred_check
      _
    $region11: #{partial_bce_loss.1} parent=1 // pred_check_branch
      %37 = sbr.rel (0) target = $region13
    $region12: #{partial_bce_loss.1} parent=1 // pred_region
      %s39 = ssub.s32 512, 512
      %40 = vsyncadd [#allocation6], %s39
      %s41 = sshll.u32 [#allocation7], 4
      %s42 = int_to_ptr.vmem [resolvable:$true] %s41
      %47 = dma.hbm_to_vmem [thread:$0]  %s2, 512, %s42, [#allocation6], 256, 256, 16
    $region13: #{partial_bce_loss.1} parent=1 // pred_fallthru
      _
    // Predicated region
    $region14: #{partial_bce_loss.1} parent=1 // pred_check
      _
    $region15: #{partial_bce_loss.1} parent=1 // pred_check_branch
      %49 = sbr.rel (0) target = $region17
    $region16: #{partial_bce_loss.1} parent=1 // pred_region
      _
    $region17: #{partial_bce_loss.1} parent=1 // pred_fallthru
      _
    // Predicated region
    $region18: #{partial_bce_loss.1} parent=1 // pred_check
      _
    $region19: #{partial_bce_loss.1} parent=1 // pred_check_branch
      %51 = sbr.rel (0) target = $region21
    $region20: #{partial_bce_loss.1} parent=1 // pred_region
      %52 = dma.done [#allocation3], 512
    $region21: #{partial_bce_loss.1} parent=1 // pred_fallthru
      _
    // Predicated region
    $region22: #{partial_bce_loss.1} parent=1 // pred_check
      _
    $region23: #{partial_bce_loss.1} parent=1 // pred_check_branch
      %54 = sbr.rel (0) target = $region25
    $region24: #{partial_bce_loss.1} parent=1 // pred_region
      %55 = dma.done [#allocation6], 512
    $region25: #{partial_bce_loss.1} parent=1 // pred_fallthru
      _
    // Predicated region
    $region26: #{partial_bce_loss.1} parent=1 // pred_check
      _
    $region27: #{partial_bce_loss.1} parent=1 // pred_check_branch
      %57 = sbr.rel (0) target = $region29
    $region28: #{partial_bce_loss.1} parent=1 // pred_region
      %58 = dma.done [#allocation6], 512
    $region29: #{partial_bce_loss.1} parent=1 // pred_fallthru
      _
    %v59 = vld [vmem:[#allocation2] sm:$0xff]
    %v60 = vld [vmem:[#allocation2 + $0x8] sm:$0xff]
    %v61 = vld [vmem:[#allocation2 + $0x10] sm:$0xff]
    %v62 = vld [vmem:[#allocation2 + $0x18] sm:$0xff]
    %v63 = vld [vmem:[#allocation5] sm:$0xff]
    %v64 = vld [vmem:[#allocation5 + $0x8] sm:$0xff]
    %v65 = vld [vmem:[#allocation5 + $0x10] sm:$0xff]
    %v66 = vld [vmem:[#allocation5 + $0x18] sm:$0xff]
    %v67 = vld [vmem:[#allocation7] sm:$0xff]
    %v68 = vld [vmem:[#allocation7 + $0x8] sm:$0xff]
    %v69 = vld [vmem:[#allocation7 + $0x10] sm:$0xff]
    %v70 = vld [vmem:[#allocation7 + $0x18] sm:$0xff]
    %v71 = vld [vmem:[%s3] sm:$0xff]
    %v72 = vld [vmem:[%s3 + $0x8] sm:$0xff]
    %v73 = vmax.f32 %v59, 0.0
    %v74 = vmax.f32 %v60, 0.0
    %v75 = vmax.f32 %v61, 0.0
    %v76 = vmax.f32 %v62, 0.0
    %v77 = vmul.f32 %v59, %v63
    %v78 = vmul.f32 %v60, %v64
    %v79 = vmul.f32 %v61, %v65
    %v80 = vmul.f32 %v62, %v66
    %v81 = vsub.f32 %v73, %v77
    %v82 = vsub.f32 %v74, %v78
    %v83 = vsub.f32 %v75, %v79
    %v84 = vsub.f32 %v76, %v80
    %v85 = vand.u32 2147483647, %v59
    %v86 = vand.u32 2147483647, %v60
    %v87 = vand.u32 2147483647, %v61
    %v88 = vand.u32 2147483647, %v62
    %v89 = vsub.f32 0.0, %v85
    %v90 = vsub.f32 0.0, %v86
    %v91 = vsub.f32 0.0, %v87
    %v92 = vsub.f32 0.0, %v88
    %v93 = vmul.f32 %v89, 1.442695
    %v94 = vpow.pop %v93
    %v95 = vmul.f32 %v90, 1.442695
    %v96 = vpow.pop %v95
    %v97 = vmul.f32 %v91, 1.442695
    %v98 = vpow.pop %v97
    %v99 = vmul.f32 %v92, 1.442695
    %v100 = vpow.pop %v99
    %v101 = vadd.f32 %v94, 1.0
    %v102 = vlog2.pop %v101
    %v103 = vmul.f32 %v102, 0.6931472
    %v104 = vmul.f32 -0.5, %v94
    %v105 = vadd.f32 %v104, 1.0
    %v106 = vmul.f32 %v105, %v94
    %v107 = vand.u32 2147483647, %v94
    %vm108 = vcmp.lt.f32.partialorder %v107, 0.0004427343
    %v109 = vsel %vm108, %v106, %v103
    %v110 = vadd.f32 %v96, 1.0
    %v111 = vlog2.pop %v110
    %v112 = vmul.f32 %v111, 0.6931472
    %v113 = vmul.f32 -0.5, %v96
    %v114 = vadd.f32 %v113, 1.0
    %v115 = vmul.f32 %v114, %v96
    %v116 = vand.u32 2147483647, %v96
    %vm117 = vcmp.lt.f32.partialorder %v116, 0.0004427343
    %v118 = vsel %vm117, %v115, %v112
    %v119 = vadd.f32 %v98, 1.0
    %v120 = vlog2.pop %v119
    %v121 = vmul.f32 %v120, 0.6931472
    %v122 = vmul.f32 -0.5, %v98
    %v123 = vadd.f32 %v122, 1.0
    %v124 = vmul.f32 %v123, %v98
    %v125 = vand.u32 2147483647, %v98
    %vm126 = vcmp.lt.f32.partialorder %v125, 0.0004427343
    %v127 = vsel %vm126, %v124, %v121
    %v128 = vadd.f32 %v100, 1.0
    %v129 = vlog2.pop %v128
    %v130 = vmul.f32 %v129, 0.6931472
    %v131 = vmul.f32 -0.5, %v100
    %v132 = vadd.f32 %v131, 1.0
    %v133 = vmul.f32 %v132, %v100
    %v134 = vand.u32 2147483647, %v100
    %vm135 = vcmp.lt.f32.partialorder %v134, 0.0004427343
    %v136 = vsel %vm135, %v133, %v130
    %v137 = vadd.f32 %v81, %v109
    %v138 = vadd.f32 %v82, %v118
    %v139 = vadd.f32 %v83, %v127
    %v140 = vadd.f32 %v84, %v136
    %v141 = vmul.f32 %v137, %v67
    %v142 = vmul.f32 %v138, %v68
    %v143 = vmul.f32 %v139, %v69
    %v144 = vmul.f32 %v140, %v70
    %v145 = vadd.f32 %v141, %v142
    %146 = vadd.xlane.f32.xlu0 %v145
    %v147 = vpop.xlane.xlu0 %146
    %v148 = vadd.f32 %v143, %v144
    %149 = vadd.xlane.f32.xlu0 %v148
    %v150 = vpop.xlane.xlu0 %149
    %v151 = vmul.f32 %v147, %v71
    %v152 = vmul.f32 %v150, %v72
    %vm153 = vcmask 7168
    %v154 = vsel %vm153, %v151, 0.0
    %v155 = vsel %vm153, %v152, 0.0
    %v156 = vadd.f32 %v154, %v155
    %157 = vadd.xlane.f32.xlu0 %v156
    %v158 = vpop.xlane.xlu0 %157
    %v159 = vrot.slane %v158, 4
    %v160 = vadd.f32 %v158, %v159
    %v161 = vrot.slane %v160, 2
    %v162 = vadd.f32 %v160, %v161
    %v163 = vrot.slane %v162, 1
    %v164 = vadd.f32 %v162, %v163
    %s165 = vtos %v164
    %s166 = scalar_lea.smem [#allocation8], 0
    %167 = sst [smem:[%s166]] %s165
    // Predicated region
    $region30: #{partial_bce_loss.1} parent=1 // pred_check
      _
    $region31: #{partial_bce_loss.1} parent=1 // pred_check_branch
      %169 = sbr.rel (0) target = $region33
    $region32: #{partial_bce_loss.1} parent=1 // pred_region
      %s171 = ssub.s32 16, 16
      %172 = vsyncadd [#allocation4], %s171
      %175 = dma.smem_to_hbm [#allocation8], 16, %s4, [#allocation4]
    $region33: #{partial_bce_loss.1} parent=1 // pred_fallthru
      _
    // Predicated region
    $region34: #{partial_bce_loss.1} parent=1 // pred_check
      _
    $region35: #{partial_bce_loss.1} parent=1 // pred_check_branch
      %177 = sbr.rel (0) target = $region37
    $region36: #{partial_bce_loss.1} parent=1 // pred_region
      %178 = dma.done [#allocation4], 16
    $region37: #{partial_bce_loss.1} parent=1 // pred_fallthru
      _
    %179 = sfence
    %180 = vsyncpa [#allocation3], 1
    %181 = vsyncpa [#allocation6], 1
    %182 = vsyncpa [#allocation4], 1

</llo_original>
